<compile_context>
chip_gen: v6e
topology: v6e:2x2x1
jax: 0.10.0
libtpu: 0.0.40
codegen_flags: <defaults>
</compile_context>

<pallas_src>
import math

import jax
import jax.numpy as jnp
from jax.experimental import pallas as pl
from jax.experimental.pallas import tpu as pltpu


def _sinusoidal_kernel(t_ref, freqs_ref, out_ref):
    # t_ref:     [TB, 1]    f32 (VMEM, tiled over batch)
    # freqs_ref: [1, half]  f32 (VMEM, resident across the grid)
    # out_ref:   [TB, dim]  (VMEM, tiled over batch)
    args = t_ref[...] * freqs_ref[...]                      # broadcast outer product [TB, half]
    emb = jnp.concatenate([jnp.sin(args), jnp.cos(args)], axis=-1)   # [TB, dim] in vregs
    out_ref[...] = emb.astype(out_ref.dtype)                # single lane-dense full-tile store


def _reference(time: jax.Array, dim: int) -> jax.Array:
    half = dim // 2
    scale = math.log(10000.0) / (half - 1)
    freqs = jnp.exp(jnp.arange(half, dtype=jnp.float32) * -scale)
    args = time.astype(jnp.float32)[:, None] * freqs[None, :]
    return jnp.concatenate([jnp.sin(args), jnp.cos(args)], axis=-1)


def _pick_tile_rows(B: int, dim: int, block_rows=None) -> int:
    # ~4 MiB f32 output tile target; double-buffered (8 MiB) this fits every chip's
    # scoped-VMEM default (v5e 16 MiB, v6e/v7x 32 MiB) with headroom.
    target_bytes = 4 << 20
    budget = max(8, ((target_bytes // (4 * dim)) // 8) * 8)
    # v7x has 2 TensorCores: keep >= 2 grid blocks when B allows so the "parallel"
    # batch axis can be split across cores.
    half_b = max(8, (((B + 1) // 2) + 7) // 8 * 8)
    tb = min(budget, half_b)
    if block_rows is not None:
        tb = min(tb, max(8, (block_rows // 8) * 8))
    return tb


def sinusoidal_position_embeddings(time: jax.Array, dim: int, *,
                                    block_rows: int | None = None,
                                    out_dtype=jnp.float32,
                                    force_pallas: bool = False) -> jax.Array:
    """Pallas TPU implementation of SinusoidalPositionEmbeddings.forward."""
    assert dim % 2 == 0 and dim >= 4, "dim must be even and >= 4"
    B = time.shape[0]
    half = dim // 2

    # Tiny problems: a pallas_call launch + one grid step costs ~1 us; below a few
    # MiB of output XLA's fused iota/exp/sin/cos is at parity or faster.
    if not force_pallas and B * dim < (1 << 19):
        return _reference(time, dim).astype(out_dtype)

    tb = _pick_tile_rows(B, dim, block_rows)
    n_blocks = pl.cdiv(B, tb)
    b_pad = n_blocks * tb

    t2 = time.astype(jnp.float32).reshape(B, 1)
    if b_pad != B:
        # Pad only the tiny input so the last grid step reads in-bounds data; the
        # output keeps its exact (B, dim) shape and Pallas clips the final partial
        # block's writeback -- no wrapper-side out[:B] slice (no extra HBM pass).
        t2 = jnp.pad(t2, ((0, b_pad - B), (0, 0)))

    scale = math.log(10000.0) / (half - 1)
    freqs = jnp.exp(jnp.arange(half, dtype=jnp.float32) * -scale).reshape(1, half)

    cost = pl.CostEstimate(
        flops=b_pad * half,                                   # the outer-product multiplies
        transcendentals=b_pad * dim,                          # sin(half) + cos(half) per row
        bytes_accessed=4 * (b_pad + half)
        + jnp.dtype(out_dtype).itemsize * B * dim,
    )

    return pl.pallas_call(
        _sinusoidal_kernel,
        out_shape=jax.ShapeDtypeStruct((B, dim), out_dtype),
        grid=(n_blocks,),
        in_specs=[
            pl.BlockSpec((tb, 1), lambda i: (i, 0)),          # time tile, marches over batch
            pl.BlockSpec((1, half), lambda i: (0, 0)),        # freqs, resident across grid
        ],
        out_specs=pl.BlockSpec((tb, dim), lambda i: (i, 0)),
        compiler_params=pltpu.CompilerParams(
            dimension_semantics=("parallel",),                # megacore-shard the batch axis
        ),
        cost_estimate=cost,
    )(t2, freqs)


if __name__ == "__main__":
    key = jax.random.PRNGKey(0)

    # Case 1: small dim, ragged batch (grid of 3 blocks, partial final out-block).
    B1, dim1 = 20, 32
    t1 = jax.random.uniform(key, (B1,), dtype=jnp.float32, minval=0.0, maxval=1000.0)
    out1 = sinusoidal_position_embeddings(t1, dim1, block_rows=8, force_pallas=True)
    out1 = jax.block_until_ready(out1)
    ref1 = _reference(t1, dim1)
    assert out1.shape == (B1, dim1)
    assert jnp.allclose(out1, ref1, atol=1e-5, rtol=1e-5)

    # Case 2: lane-aligned hidden dim (single unmasked full-width store), 2 blocks.
    key2 = jax.random.PRNGKey(1)
    B2, dim2 = 64, 128
    t2 = jax.random.uniform(key2, (B2,), dtype=jnp.float32, minval=0.0, maxval=1000.0)
    out2 = sinusoidal_position_embeddings(t2, dim2, block_rows=32, force_pallas=True)
    out2 = jax.block_until_ready(out2)
    ref2 = _reference(t2, dim2)
    assert out2.shape == (B2, dim2)
    assert jnp.allclose(out2, ref2, atol=1e-5, rtol=1e-5)

    # Case 3: automatic tile sizing (no block_rows override), exact batch divide.
    key3 = jax.random.PRNGKey(2)
    B3, dim3 = 256, 64
    t3 = jax.random.uniform(key3, (B3,), dtype=jnp.float32, minval=0.0, maxval=1000.0)
    out3 = sinusoidal_position_embeddings(t3, dim3, force_pallas=True)
    out3 = jax.block_until_ready(out3)
    ref3 = _reference(t3, dim3)
    assert out3.shape == (B3, dim3)
    assert jnp.allclose(out3, ref3, atol=1e-5, rtol=1e-5)

    print("KERNEL_OK")
</pallas_src>

<mosaic_0001>
module attributes {stable_mosaic.version = 11 : i64} {
  func.func @_sinusoidal_kernel(%arg0: i32, %arg1: memref<8x1xf32, #tpu.memory_space<vmem>>, %arg2: memref<1x16xf32, #tpu.memory_space<vmem>>, %arg3: memref<8x32xf32, #tpu.memory_space<vmem>>) attributes {dimension_semantics = [#tpu.dimension_semantics<parallel>], iteration_bounds = array<i64: 3>, scalar_prefetch = 0 : i64, scratch_operands = 0 : i64, tpu.core_type = #tpu.core_type<tc>, window_params = [{transform_indices = @transform_0, window_bounds = array<i64: 8, 1>}, {pipeline_mode = #tpu.pipeline_mode<synchronous>, transform_indices = @transform_1, window_bounds = array<i64: 1, 16>}, {transform_indices = @transform_2, window_bounds = array<i64: 8, 32>}]} {
    %c0 = arith.constant 0 : index
    %c0_0 = arith.constant 0 : index
    %0 = vector.load %arg1[%c0, %c0_0] : memref<8x1xf32, #tpu.memory_space<vmem>>, vector<8x1xf32>
    %c0_1 = arith.constant 0 : index
    %c0_2 = arith.constant 0 : index
    %1 = vector.load %arg2[%c0_1, %c0_2] : memref<1x16xf32, #tpu.memory_space<vmem>>, vector<1x16xf32>
    %2 = vector.broadcast %0 : vector<8x1xf32> to vector<8x16xf32>
    %3 = vector.broadcast %1 : vector<1x16xf32> to vector<8x16xf32>
    %4 = arith.mulf %2, %3 : vector<8x16xf32>
    %5 = math.sin %4 : vector<8x16xf32>
    %6 = math.cos %4 : vector<8x16xf32>
    %7 = tpu.concatenate %5, %6 in 1 : vector<8x16xf32>, vector<8x16xf32> -> vector<8x32xf32>
    %c0_3 = arith.constant 0 : index
    %c0_4 = arith.constant 0 : index
    %8 = vector.load %arg3[%c0_3, %c0_4] : memref<8x32xf32, #tpu.memory_space<vmem>>, vector<8x32xf32>
    tpu.vector_store %arg3[%c0_3, %c0_4], %7 {strides = array<i32>} : memref<8x32xf32, #tpu.memory_space<vmem>>, vector<8x32xf32>,
    return
  }
  func.func @transform_0(%arg0: i32) -> (i32, i32) {
    %c0_i32 = arith.constant 0 : i32
    %c0_i32_0 = arith.constant 0 : i32
    return %arg0, %c0_i32 : i32, i32
  }
  func.func @transform_1(%arg0: i32) -> (i32, i32) {
    %c0_i32 = arith.constant 0 : i32
    %c0_i32_0 = arith.constant 0 : i32
    %c0_i32_1 = arith.constant 0 : i32
    return %c0_i32, %c0_i32_0 : i32, i32
  }
  func.func @transform_2(%arg0: i32) -> (i32, i32) {
    %c0_i32 = arith.constant 0 : i32
    %c0_i32_0 = arith.constant 0 : i32
    return %arg0, %c0_i32 : i32, i32
  }
}

</mosaic_0001>

<llo_original>
// kernel: tpu_custom_call.1
$region0: #{tpu_custom_call.1}
  #allocation0 [shape = 'u32[]', space=smem, size = 0x4, offset = 0x4, fixed_abs, tag = 'smem constant byte address 0x4 - core index']
  #allocation1 [shape = 'u32[144,128]{1,0:T(1,128)}', space=vmem, size = 0x12000, scoped, tag = 'internal scratch']
  %s0 = inlined_call_operand.vmem [shape: f32[24,1], index: 0, kind: input, shape index: {}]
  %s1 = inlined_call_operand.vmem [shape: f32[1,16], index: 1, kind: input, shape index: {}]
  %s2 = inlined_call_operand.hbm [shape: f32[20,32], index: 2, kind: output, shape index: {}]
  %s3 = sld [smem:[#allocation0]]
  $region41: #{tpu_custom_call.1} parent=0
    _
  %s5 = ssub.s32 1, %s3
  %s6 = scalar_select 0, %s5, %s3
  $region1: #{tpu_custom_call.1} parent=0
    #allocation2 [shape = 'u8[8192]{0}', space=vmem, size = 0x2000, scoped, tag = 'output window, operand 0']
    #allocation3 [shape = 's32[2]{0}', space=sflag, size = 0x8, scoped, tag = 'scoped memory for tpu_custom_call.1']
    %7 = vsyncpa [#allocation3], 0
    %s8 = scalar_lea.sflag [#allocation3], 1
    %9 = vsyncpa %s8, 0
    loop: start=0, step=1, limit=5
    $region2: #{tpu_custom_call.1} parent=1 // loop_pre_header
      _
    $region3: #{tpu_custom_call.1} parent=1 // loop_header
      %s11 = sphi 0, %s15
      %p12 = scmp.ge.s32.totalorder %s11, 5
      %s21 = sphi 0, %s23
      %s24 = sphi 0, %s21
      %s25 = sphi 0, %s24
      %s41 = sphi 0, %s25
      %s45 = sphi 0, %s45
      %s47 = sphi 0, %s45
      %s48 = sphi 0, %s47
      %s62 = sphi 0, %s48
      %s68 = sphi 0, %s70
      %s71 = sphi 0, %s68
      %s72 = sphi 0, %s71
      %s88 = sphi 0, %s72
    $region4: #{tpu_custom_call.1} parent=1 // loop_header_branch
      %14 = sbr.rel (%p12) target = $region8
    $region5: #{tpu_custom_call.1} parent=1 // loop_body
      %s16 = ssub.s32 %s11, 1
      %s17 = ssub.s32 %s11, 2
      %s18 = sadd.s32 %s11, 1
      %s19 = ssub.s32 %s11, %s18
      %p20 = scmp.eq.s32.totalorder %s19, 0
      %s22 = sadd.s32 %s21, 1
      %s23 = scalar_select %p20, %s21, %s22
      %p26 = pneg %p20
      %p27 = scmp.eq.s32.totalorder %s11, 2
      %p28 = por %p26, %p27
      %p29 = scmp.ne.s32.totalorder %s21, %s24
      %p30 = scmp.eq.s32.totalorder %s11, 0
      %p31 = por %p29, %p30
      %p32 = scmp.ne.s32.totalorder %s21, %s24
      %p33 = scmp.eq.s32.totalorder %s16, 2
      %p34 = por %p32, %p33
      %p35 = scmp.ne.s32.totalorder %s24, %s25
      %p36 = scmp.eq.s32.totalorder %s16, 0
      %p37 = por %p35, %p36
      %p38 = scmp.ne.s32.totalorder %s24, %s25
      %p39 = scmp.eq.s32.totalorder %s17, 2
      %p40 = por %p38, %p39
      %p42 = scmp.ne.s32.totalorder %s25, %s41
      %p43 = scmp.eq.s32.totalorder %s17, 0
      %p44 = por %p42, %p43
      %s46 = sadd.s32 %s45, 1
      %p49 = scmp.eq.s32.totalorder %s11, 2
      %p50 = scmp.ne.s32.totalorder %s45, %s47
      %p51 = scmp.eq.s32.totalorder %s11, 0
      %p52 = por %p50, %p51
      %p53 = scmp.ne.s32.totalorder %s45, %s47
      %p54 = scmp.eq.s32.totalorder %s16, 2
      %p55 = por %p53, %p54
      %p56 = scmp.ne.s32.totalorder %s47, %s48
      %p57 = scmp.eq.s32.totalorder %s16, 0
      %p58 = por %p56, %p57
      %p59 = scmp.ne.s32.totalorder %s47, %s48
      %p60 = scmp.eq.s32.totalorder %s17, 2
      %p61 = por %p59, %p60
      %p63 = scmp.ne.s32.totalorder %s48, %s62
      %p64 = scmp.eq.s32.totalorder %s17, 0
      %p65 = por %p63, %p64
      %s66 = ssub.s32 %s11, %s18
      %p67 = scmp.eq.s32.totalorder %s66, 0
      %s69 = sadd.s32 %s68, 1
      %s70 = scalar_select %p67, %s68, %s69
      %p73 = pneg %p67
      %p74 = scmp.eq.s32.totalorder %s11, 2
      %p75 = por %p73, %p74
      %p76 = scmp.ne.s32.totalorder %s68, %s71
      %p77 = scmp.eq.s32.totalorder %s11, 0
      %p78 = por %p76, %p77
      %p79 = scmp.ne.s32.totalorder %s68, %s71
      %p80 = scmp.eq.s32.totalorder %s16, 2
      %p81 = por %p79, %p80
      %p82 = scmp.ne.s32.totalorder %s71, %s72
      %p83 = scmp.eq.s32.totalorder %s16, 0
      %p84 = por %p82, %p83
      %p85 = scmp.ne.s32.totalorder %s71, %s72
      %p86 = scmp.eq.s32.totalorder %s17, 2
      %p87 = por %p85, %p86
      %p89 = scmp.ne.s32.totalorder %s72, %s88
      %p90 = scmp.eq.s32.totalorder %s17, 0
      %p91 = por %p89, %p90
      %p92 = scmp.le.s32.totalorder 1, %s11
      %p93 = scmp.lt.s32.totalorder %s11, 4
      %p94 = pnand %p92, %p93
      %p95 = pneg %p94
      // Predicated region
      $region9: #{tpu_custom_call.1} parent=5 // pred_check
        _
      $region10: #{tpu_custom_call.1} parent=5 // pred_check_branch
        %97 = sbr.rel (%p94) target = $region12
      $region11: #{tpu_custom_call.1} parent=5 // pred_region
        %s98 = ssub.s32 %s11, 1
        // Predicated region
        $region13: #{tpu_custom_call.1} parent=11 // pred_check
          %p99 = pneg %p58
        $region14: #{tpu_custom_call.1} parent=11 // pred_check_branch
          %101 = sbr.rel (%p99) target = $region16
        $region15: #{tpu_custom_call.1} parent=11 // pred_region
          _
        $region16: #{tpu_custom_call.1} parent=11 // pred_fallthru
          _
      $region12: #{tpu_custom_call.1} parent=5 // pred_fallthru
        _
      %p102 = scmp.lt.s32.totalorder %s11, 3
      // Predicated region
      $region17: #{tpu_custom_call.1} parent=5 // pred_check
        %p103 = pneg %p102
      $region18: #{tpu_custom_call.1} parent=5 // pred_check_branch
        %105 = sbr.rel (%p103) target = $region20
      $region19: #{tpu_custom_call.1} parent=5 // pred_region
        // Predicated region
        $region21: #{tpu_custom_call.1} parent=19 // pred_check
          %p106 = pneg %p31
        $region22: #{tpu_custom_call.1} parent=19 // pred_check_branch
          %108 = sbr.rel (%p106) target = $region24
        $region23: #{tpu_custom_call.1} parent=19 // pred_region
          %p109 = scmp.lt.s32.totalorder %s11, 2
          %s110 = scalar_select %p109, %s11, 2
          %s111 = smul.addr %s110, 8
          %s112 = scalar_lea.vmem %s0, %s111
        $region24: #{tpu_custom_call.1} parent=19 // pred_fallthru
          _
      $region20: #{tpu_custom_call.1} parent=5 // pred_fallthru
        _
      %p113 = scmp.le.s32.totalorder 1, %s11
      %p114 = scmp.lt.s32.totalorder %s11, 4
      %p115 = pnand %p113, %p114
      %p116 = pneg %p115
      // Predicated region
      $region25: #{tpu_custom_call.1} parent=5 // pred_check
        _
      $region26: #{tpu_custom_call.1} parent=5 // pred_check_branch
        %118 = sbr.rel (%p115) target = $region28
      $region27: #{tpu_custom_call.1} parent=5 // pred_region
        %s119 = ssub.s32 %s11, 1
        %p120 = scmp.lt.s32.totalorder %s16, 2
        %s121 = scalar_select %p120, %s16, 2
        %s122 = smul.addr %s121, 8
        %s123 = scalar_lea.vmem %s0, %s122
        %p124 = pneg %p37
        %p125 = pneg %p34
        %p126 = pneg %p58
        %p127 = pneg %p55
        %p128 = pneg %p84
        %p129 = pneg %p81
        %s130 = sand.u32 %s71, 1
        %s131 = scalar_lea.sflag [#allocation3], %s130
        %s132 = sand.u32 %s71, 1
        %s133 = smul.addr %s132, 8
        %s134 = scalar_lea.vmem [#allocation2], %s133
        %p135 = scmp.lt.s32.totalorder %s16, 2
        %s136 = scalar_select %p135, %s16, 2
        %s137 = smul.addr %s136, 8
        %s138 = scalar_lea.vmem %s0, %s137
        %v139 = vld [vmem:[%s138] sm:$0xff]
        %v140 = vld [vmem:[%s1] sm:$0x1]
        %142 = vset.pattern.permute.xlu0 0
        %143 = vperm.xlu0 %142, %v139
        %v144 = vpop.permute.xlu0 %143
        %v147 = vlaneseq
        %v148 = vshrl.u32 %v147, 7
        %v149 = vsub.s32 0, %v148
        %v150 = vrot.slane %v140, %v149
        %v152 = vmul.f32 %v144, %v150
        %v153 = vand.u32 2147483647, %v152
        %vm154 = vcmp.le.f32.partialorder %v153, 0.7853982
        %vm155 = vcmp.lt.s32.totalorder %v152, 0
        %v156 = vand.u32 %v152, 2139095040
        %v157 = vshrl.u32 %v156, 23
        %v158 = vsub.s32 %v157, 127
        %v159 = vand.u32 2147483647, %v152
        %v160 = vand.u32 %v159, 8388607
        %v161 = vor.u32 %v160, 8388608
        %v162 = vsub.s32 0, %v161
        %v163 = vadd.s32 %v158, 1
        %vm164 = vcmp.gt.s32.totalorder %v163, 0
        %v165 = vsel %vm164, %v163, 0
        %v166 = vshrl.u32 %v165, 5
        %v167 = vand.u32 %v165, 31
        %v168 = vsub.s32 32, %v167
        %v169 = vshrl.u32 683565275, %v168
        %v170 = vshll.u32 683565275, %v167
        %v171 = vshrl.u32 2475754826, %v168
        %v172 = vor.u32 %v170, %v171
        %v173 = vshll.u32 2475754826, %v167
        %v174 = vshrl.u32 2131351028, %v168
        %v175 = vor.u32 %v173, %v174
        %v176 = vshll.u32 2131351028, %v167
        %v177 = vshrl.u32 2102212464, %v168
        %v178 = vor.u32 %v176, %v177
        %v179 = vshll.u32 2102212464, %v167
        %v180 = vshrl.u32 920167782, %v168
        %v181 = vor.u32 %v179, %v180
        %v182 = vshll.u32 920167782, %v167
        %v183 = vshrl.u32 1326507024, %v168
        %v184 = vor.u32 %v182, %v183
        %vm185 = vcmp.lt.s32.totalorder %v166, 1
        %vm186 = vcmp.lt.s32.totalorder %v166, 2
        %vm187 = vcmp.lt.s32.totalorder %v166, 3
        %vm188 = vcmp.lt.s32.totalorder %v166, 4
        %v189 = vsel %vm185, %v169, %v172
        %v190 = vsel %vm188, %v178, 2102212464
        %v191 = vsel %vm187, %v175, %v190
        %v192 = vsel %vm186, %v189, %v191
        %v193 = vsel %vm185, %v172, %v175
        %v194 = vsel %vm188, %v181, 920167782
        %v195 = vsel %vm187, %v178, %v194
        %v196 = vsel %vm186, %v193, %v195
        %v197 = vsel %vm185, %v175, %v178
        %v198 = vsel %vm188, %v184, 1326507024
        %v199 = vsel %vm187, %v181, %v198
        %v200 = vsel %vm186, %v197, %v199
        %v201 = vshll.u32 %v161, 8
        %v202 = vmul.u32.u64.compose %v201, %v200
        %v203 = vextract.low.u32 %v202
        %v204 = vextract.high.u32 %v202
        %v205 = vmul.u32.u64.compose %v201, %v196
        %v206 = vextract.low.u32 %v205
        %v207 = vextract.high.u32 %v205
        %v208 = vmul.u32 %v201, %v192
        %v209 = vadd.s32 %v204, %v206
        %vm210 = vc.u32 %v204, %v206
        %v211 = vadd.s32 %v207, 1
        %v212 = vsel %vm210, %v211, %v207
        %v213 = vadd.s32 %v208, %v212
        %v214 = vadd.s32 %v213, 536870912
        %v215 = vshrl.u32 %v214, 30
        %v216 = vshll.u32 %v215, 30
        %v217 = vsub.s32 %v213, %v216
        %vm218 = vcmp.lt.s32.totalorder %v217, 0
        %v219 = vsub.s32 0, %v217
        %v220 = vsel %vm218, %v219, %v217
        %v221 = vclz %v220
        %v222 = vsub.s32 %v221, 2
        %vm223 = vcmp.gt.s32.totalorder 0, %v222
        %v224 = vsel %vm223, 0, %v222
        %v225 = vsub.s32 32, %v224
        %v226 = vshll.u32 %v217, %v224
        %v227 = vshrl.u32 %v209, %v225
        %v228 = vor.u32 %v226, %v227
        %v229 = vsub.s32 4294967266, %v224
        %v230 = vadd.s32 %v229, 127
        %v231 = vshll.u32 %v230, 23
        %v232 = vor.u32 4788187, %v231
        %v233 = vand.u32 2147483647, %v232
        %v235 = vcvt.s32.f32 %v228
        %v236 = vmul.f32 %v235, %v233
        %v237 = vxor.u32 %v236, 2147483648
        %v238 = vsel %vm155, %v237, %v236
        %v239 = vsub.s32 4, %v215
        %v240 = vsel %vm155, %v239, %v215
        %v241 = vsel %vm154, %v152, %v238
        %v242 = vsel %vm154, 0, %v240
        %v243 = vcosq.f32.pop %v241
        %v244 = vsinq.f32.pop %v241
        %vm245 = vweird.f32 %v152
        %v246 = vadd.s32 %v242, 3
        %v247 = vand.u32 %v246, 3
        %vm248 = vcmp.lt.s32.totalorder %v247, 2
        %vm249 = vcmp.eq.s32.totalorder %v247, 0
        %v250 = vxor.u32 %v244, 2147483648
        %v251 = vsel %vm249, %v243, %v250
        %vm252 = vcmp.eq.s32.totalorder %v247, 2
        %v253 = vxor.u32 %v243, 2147483648
        %v254 = vsel %vm252, %v253, %v244
        %v255 = vsel %vm248, %v251, %v254
        %v256 = vsel %vm245, nan, %v255
        %v257 = vand.u32 2147483647, %v152
        %vm258 = vcmp.le.f32.partialorder %v257, 0.7853982
        %vm259 = vcmp.lt.s32.totalorder %v152, 0
        %v260 = vand.u32 %v152, 2139095040
        %v261 = vshrl.u32 %v260, 23
        %v262 = vsub.s32 %v261, 127
        %v263 = vand.u32 2147483647, %v152
        %v264 = vand.u32 %v263, 8388607
        %v265 = vor.u32 %v264, 8388608
        %v266 = vsub.s32 0, %v265
        %v267 = vadd.s32 %v262, 1
        %vm268 = vcmp.gt.s32.totalorder %v267, 0
        %v269 = vsel %vm268, %v267, 0
        %v270 = vshrl.u32 %v269, 5
        %v271 = vand.u32 %v269, 31
        %v272 = vsub.s32 32, %v271
        %v273 = vshrl.u32 683565275, %v272
        %v274 = vshll.u32 683565275, %v271
        %v275 = vshrl.u32 2475754826, %v272
        %v276 = vor.u32 %v274, %v275
        %v277 = vshll.u32 2475754826, %v271
        %v278 = vshrl.u32 2131351028, %v272
        %v279 = vor.u32 %v277, %v278
        %v280 = vshll.u32 2131351028, %v271
        %v281 = vshrl.u32 2102212464, %v272
        %v282 = vor.u32 %v280, %v281
        %v283 = vshll.u32 2102212464, %v271
        %v284 = vshrl.u32 920167782, %v272
        %v285 = vor.u32 %v283, %v284
        %v286 = vshll.u32 920167782, %v271
        %v287 = vshrl.u32 1326507024, %v272
        %v288 = vor.u32 %v286, %v287
        %vm289 = vcmp.lt.s32.totalorder %v270, 1
        %vm290 = vcmp.lt.s32.totalorder %v270, 2
        %vm291 = vcmp.lt.s32.totalorder %v270, 3
        %vm292 = vcmp.lt.s32.totalorder %v270, 4
        %v293 = vsel %vm289, %v273, %v276
        %v294 = vsel %vm292, %v282, 2102212464
        %v295 = vsel %vm291, %v279, %v294
        %v296 = vsel %vm290, %v293, %v295
        %v297 = vsel %vm289, %v276, %v279
        %v298 = vsel %vm292, %v285, 920167782
        %v299 = vsel %vm291, %v282, %v298
        %v300 = vsel %vm290, %v297, %v299
        %v301 = vsel %vm289, %v279, %v282
        %v302 = vsel %vm292, %v288, 1326507024
        %v303 = vsel %vm291, %v285, %v302
        %v304 = vsel %vm290, %v301, %v303
        %v305 = vshll.u32 %v265, 8
        %v306 = vmul.u32.u64.compose %v305, %v304
        %v307 = vextract.low.u32 %v306
        %v308 = vextract.high.u32 %v306
        %v309 = vmul.u32.u64.compose %v305, %v300
        %v310 = vextract.low.u32 %v309
        %v311 = vextract.high.u32 %v309
        %v312 = vmul.u32 %v305, %v296
        %v313 = vadd.s32 %v308, %v310
        %vm314 = vc.u32 %v308, %v310
        %v315 = vadd.s32 %v311, 1
        %v316 = vsel %vm314, %v315, %v311
        %v317 = vadd.s32 %v312, %v316
        %v318 = vadd.s32 %v317, 536870912
        %v319 = vshrl.u32 %v318, 30
        %v320 = vshll.u32 %v319, 30
        %v321 = vsub.s32 %v317, %v320
        %vm322 = vcmp.lt.s32.totalorder %v321, 0
        %v323 = vsub.s32 0, %v321
        %v324 = vsel %vm322, %v323, %v321
        %v325 = vclz %v324
        %v326 = vsub.s32 %v325, 2
        %vm327 = vcmp.gt.s32.totalorder 0, %v326
        %v328 = vsel %vm327, 0, %v326
        %v329 = vsub.s32 32, %v328
        %v330 = vshll.u32 %v321, %v328
        %v331 = vshrl.u32 %v313, %v329
        %v332 = vor.u32 %v330, %v331
        %v333 = vsub.s32 4294967266, %v328
        %v334 = vadd.s32 %v333, 127
        %v335 = vshll.u32 %v334, 23
        %v336 = vor.u32 4788187, %v335
        %v337 = vand.u32 2147483647, %v336
        %v339 = vcvt.s32.f32 %v332
        %v340 = vmul.f32 %v339, %v337
        %v341 = vxor.u32 %v340, 2147483648
        %v342 = vsel %vm259, %v341, %v340
        %v343 = vsub.s32 4, %v319
        %v344 = vsel %vm259, %v343, %v319
        %v345 = vsel %vm258, %v152, %v342
        %v346 = vsel %vm258, 0, %v344
        %v347 = vcosq.f32.pop %v345
        %v348 = vsinq.f32.pop %v345
        %vm349 = vweird.f32 %v152
        %v350 = vand.u32 %v346, 3
        %vm351 = vcmp.lt.s32.totalorder %v350, 2
        %vm352 = vcmp.eq.s32.totalorder %v350, 0
        %v353 = vxor.u32 %v348, 2147483648
        %v354 = vsel %vm352, %v347, %v353
        %vm355 = vcmp.eq.s32.totalorder %v350, 2
        %v356 = vxor.u32 %v347, 2147483648
        %v357 = vsel %vm355, %v356, %v348
        %v358 = vsel %vm351, %v354, %v357
        %v359 = vsel %vm349, nan, %v358
        %361 = vrot.lane.b32.xlu0 %v359, 16
        %v362 = vpop.permute.xlu0 %361
        %vm364 = vcmask 130048
        %v365 = vsel %vm364, %v256, %v362
        %vm366 = vcmask 261120
        %367 = vst.msk [vmem:[%s134] sm:$0xff] %vm366, %v365
        %s368 = sand.u32 %s71, 1
        %s369 = scalar_lea.sflag [#allocation3], %s368
        %s370 = sand.u32 %s71, 1
        %s371 = smul.addr %s370, 8
        %s372 = scalar_lea.vmem [#allocation2], %s371
        // Predicated region
        $region29: #{tpu_custom_call.1} parent=27 // pred_check
          %p373 = pneg %p81
        $region30: #{tpu_custom_call.1} parent=27 // pred_check_branch
          %375 = sbr.rel (%p373) target = $region32
        $region31: #{tpu_custom_call.1} parent=27 // pred_region
          %s377 = ssub.s32 128, 128
          %378 = vsyncadd %s369, %s377
          %s379 = smul.addr %s16, 128
          %s380 = scalar_lea.hbm %s2, %s379
          %s382 = sshll.u32 %s372, 4
          %s383 = int_to_ptr.vmem [resolvable:$true] %s382
          %385 = dma.vmem_to_hbm [thread:$0]  %s383, 128, %s380, %s369
        $region32: #{tpu_custom_call.1} parent=27 // pred_fallthru
          _
      $region28: #{tpu_custom_call.1} parent=5 // pred_fallthru
        _
      %p386 = scmp.le.s32.totalorder 2, %s11
      // Predicated region
      $region33: #{tpu_custom_call.1} parent=5 // pred_check
        %p387 = pneg %p386
      $region34: #{tpu_custom_call.1} parent=5 // pred_check_branch
        %389 = sbr.rel (%p387) target = $region36
      $region35: #{tpu_custom_call.1} parent=5 // pred_region
        %s390 = ssub.s32 %s11, 2
        // Predicated region
        $region37: #{tpu_custom_call.1} parent=35 // pred_check
          %p391 = pneg %p87
        $region38: #{tpu_custom_call.1} parent=35 // pred_check_branch
          %393 = sbr.rel (%p391) target = $region40
        $region39: #{tpu_custom_call.1} parent=35 // pred_region
          %s394 = sand.u32 %s72, 1
          %s395 = scalar_lea.sflag [#allocation3], %s394
          %s396 = sand.u32 %s72, 1
          %s397 = smul.addr %s396, 8
          %s398 = scalar_lea.vmem [#allocation2], %s397
          %399 = dma.done %s395, 128
        $region40: #{tpu_custom_call.1} parent=35 // pred_fallthru
          _
      $region36: #{tpu_custom_call.1} parent=5 // pred_fallthru
        _
    $region6: #{tpu_custom_call.1} parent=1 // loop_footer
      %s15 = sadd.s32 1, %s11
    $region7: #{tpu_custom_call.1} parent=1 // loop_footer_branch
      %10 = sbr.rel target = $region3
    $region8: #{tpu_custom_call.1} parent=1 // loop_exit
      _
    %400 = vsyncpa [#allocation3], 1
    %s401 = scalar_lea.sflag [#allocation3], 1
    %402 = vsyncpa %s401, 1

</llo_original>
